<compile_context>
chip_gen: v7x
topology: tpu7x:2x2x1
jax: 0.10.0
libtpu: 0.0.40
codegen_flags: <defaults>
</compile_context>

<pallas_src>
import functools

import jax
import jax.numpy as jnp
from jax.experimental import pallas as pl
from jax.experimental.pallas import tpu as pltpu


def _round_up(x, m):
    return ((x + m - 1) // m) * m


def _focal_factor(one_minus_p, gamma):
    """(1 - p)**gamma; exact multiply chain for small integer gamma."""
    g = float(gamma)
    if g.is_integer() and 0 <= g <= 8:
        gi = int(g)
        if gi == 0:
            return jnp.ones_like(one_minus_p)
        r = one_minus_p
        for _ in range(gi - 1):
            r = r * one_minus_p
        return r
    # Non-integer gamma: x**g = exp(g*log(x)) on the EUP, guarded at x == 0 so
    # a clamped-to-zero base never produces NaN.
    safe = jnp.maximum(one_minus_p, 1e-30)
    r = jnp.exp(g * jnp.log(safe))
    return jnp.where(one_minus_p > 0.0, r, jnp.zeros_like(one_minus_p))


def _focal_loss_kernel(logits_ref, targets_ref, alpha_ref, out_ref, *,
                       gamma, n_valid, tile_n):
    i = pl.program_id(0)

    x = logits_ref[...].astype(jnp.float32)        # (C, tile_n) classes on sublanes
    t = targets_ref[...]                           # (1, tile_n) int32, lane-dense
    a = alpha_ref[...].astype(jnp.float32)         # (C, 1)

    # Numerically-stable log-softmax pieces over the class (sublane) axis.
    m = jnp.max(x, axis=0, keepdims=True)                     # (1, tile_n)
    e = jnp.exp(x - m)                                         # (C, tile_n)
    sum_e = jnp.sum(e, axis=0, keepdims=True)                  # (1, tile_n)
    log_sum_e = jnp.log(sum_e)                                 # (1, tile_n)

    # One-hot class selection (scatter_ equivalent) via select, no mask mults.
    cls = jax.lax.broadcasted_iota(jnp.int32, x.shape, 0)      # (C, tile_n)
    hit = cls == t                                             # (C, tile_n)

    x_t = jnp.sum(jnp.where(hit, x, 0.0), axis=0, keepdims=True)      # (1, tile_n)
    e_t = jnp.sum(jnp.where(hit, e, 0.0), axis=0, keepdims=True)      # (1, tile_n)
    alpha_t = jnp.sum(jnp.where(hit, a, 0.0), axis=0, keepdims=True)  # (1, tile_n)

    log_p = x_t - m - log_sum_e                                # log softmax[target]
    # Exact divide: the focal factor is very sensitive to p when p -> 1, so an
    # approximate reciprocal would dominate the error for easy samples.
    probs = e_t / sum_e
    one_minus_p = jnp.maximum(1.0 - probs, 0.0)   # clamp: probs may exceed 1 by ulp

    loss = -alpha_t * _focal_factor(one_minus_p, gamma) * log_p   # (1, tile_n)

    # Mask the ragged tail: columns >= N read out-of-bounds / undefined data
    # (there is no wrapper pad any more); `where` selects an exact 0 for them.
    col = jax.lax.broadcasted_iota(jnp.int32, loss.shape, 1)
    masked = jnp.where(i * tile_n + col < n_valid, loss, 0.0)

    # One partial sum per tile (XLU lane reduce), stored into lane 0 of a
    # lane-dense (1, 128) output row.
    tile_sum = jnp.sum(masked, axis=1, keepdims=True)           # (1, 1)
    lane = jax.lax.broadcasted_iota(jnp.int32, (1, 128), 1)
    out_ref[...] = jnp.where(lane == 0, tile_sum, 0.0)


def _choose_tile_n(n, max_tile_n):
    """Pick a lane-dense tile width (multiple of 128).

    Large tiles amortize the ~0.35us per-grid-step overhead.  Worst-case VMEM
    at the default cap (tile_n=65536, C=8, f32): ~36 B/sample * 2 buffers
    ~= 4.7 MiB, comfortably inside v5e's 16 MiB scoped-VMEM default.  For
    large N we force an even grid of >= 2 steps so the "parallel" axis can
    shard across both TensorCores on v7x (harmless on single-TC v5e/v6e).
    """
    max_tile_n = max(128, _round_up(int(max_tile_n), 128))
    n128 = _round_up(n, 128)
    if n128 <= max_tile_n and n128 <= 16 * 1024:
        return n128                      # too little work to split across TCs
    num = max(2, pl.cdiv(n128, max_tile_n))
    num += num % 2                       # even tile count for v7x megacore
    return _round_up(pl.cdiv(n, num), 128)


def focal_loss(logits, targets, alpha, *, gamma=2.0, size_average=True,
               max_tile_n=65536):
    """logits: (N, C) float, targets: (N,) int, alpha: (C,) or (C,1) float."""
    N, C = logits.shape
    tile_n = _choose_tile_n(N, max_tile_n)
    num_tiles = pl.cdiv(N, tile_n)

    # Natural (N, C) stays the only HBM copy of the logits: the transpose is a
    # plain jnp op that allow_input_fusion lets XLA fuse into the pallas input
    # DMA (no pad, no astype -- the kernel masks the ragged tail and upcasts
    # per block, so bf16 inputs move half the bytes).
    logits_t = jnp.transpose(logits)                                   # (C, N)
    targets2d = targets.astype(jnp.int32).reshape(1, N)                # (1, N)
    alpha2d = jnp.asarray(alpha, dtype=jnp.float32).reshape(C, 1)      # (C, 1)

    kernel = functools.partial(_focal_loss_kernel, gamma=float(gamma),
                               n_valid=N, tile_n=tile_n)

    partial = pl.pallas_call(
        kernel,
        out_shape=jax.ShapeDtypeStruct((1, num_tiles * 128), jnp.float32),
        grid_spec=pltpu.PrefetchScalarGridSpec(
            num_scalar_prefetch=0,
            grid=(num_tiles,),
            in_specs=[
                pl.BlockSpec((C, tile_n), lambda i: (0, i)),   # logits tile
                pl.BlockSpec((1, tile_n), lambda i: (0, i)),   # targets tile
                pl.BlockSpec((C, 1), lambda i: (0, 0)),        # alpha (shared)
            ],
            out_specs=pl.BlockSpec((1, 128), lambda i: (0, i)),  # per-tile sum
        ),
        compiler_params=pltpu.CompilerParams(
            dimension_semantics=("parallel",),
            allow_input_fusion=(True, True, True),
        ),
    )(logits_t, targets2d, alpha2d)

    loss_sum = jnp.sum(partial)      # tiny (1, num_tiles*128) reduce in XLA
    if size_average:
        return loss_sum / jnp.float32(N)
    return loss_sum


def _reference_focal_loss(logits, targets, alpha, gamma=2.0, size_average=True):
    p = jax.nn.softmax(logits.astype(jnp.float32), axis=1)
    probs = jnp.take_along_axis(p, targets.reshape(-1, 1), axis=1)
    alpha_t = jnp.asarray(alpha, jnp.float32).reshape(-1)[targets].reshape(-1, 1)
    batch_loss = -alpha_t * (1.0 - probs) ** gamma * jnp.log(probs)
    return jnp.mean(batch_loss) if size_average else jnp.sum(batch_loss)


if __name__ == "__main__":
    num_class = 8
    key = jax.random.PRNGKey(0)
    k_logits, k_targets, k_alpha = jax.random.split(key, 3)

    # alpha=None in the PyTorch module -> torch.ones(num_class, 1)
    alpha_ones = jnp.ones((num_class,), dtype=jnp.float32)
    alpha_rand = jax.random.uniform(k_alpha, (num_class,), dtype=jnp.float32,
                                    minval=0.25, maxval=1.0)

    # Case 1: small batch, single tile, ragged tail, mean reduction.
    N1 = 37
    logits1 = jax.random.normal(k_logits, (N1, num_class), dtype=jnp.float32)
    targets1 = jax.random.randint(k_targets, (N1,), 0, num_class, dtype=jnp.int32)
    out1 = jax.block_until_ready(
        focal_loss(logits1, targets1, alpha_ones, gamma=2.0, size_average=True))
    ref1 = _reference_focal_loss(logits1, targets1, alpha_ones, gamma=2.0,
                                 size_average=True)
    assert jnp.allclose(out1, ref1, rtol=1e-4, atol=1e-6), (out1, ref1)

    # Case 2: multi-tile grid (2 tiles), sum reduction, non-trivial alpha.
    N2 = 300
    logits2 = jax.random.normal(k_logits, (N2, num_class), dtype=jnp.float32)
    targets2 = jax.random.randint(k_targets, (N2,), 0, num_class, dtype=jnp.int32)
    out2 = jax.block_until_ready(
        focal_loss(logits2, targets2, alpha_rand, gamma=2.0, size_average=False,
                   max_tile_n=256))
    ref2 = _reference_focal_loss(logits2, targets2, alpha_rand, gamma=2.0,
                                 size_average=False)
    assert jnp.allclose(out2, ref2, rtol=1e-4, atol=1e-6), (out2, ref2)

    # Case 3: non-integer gamma (guarded exp/log path), mean reduction.
    out3 = jax.block_until_ready(
        focal_loss(logits2, targets2, alpha_rand, gamma=1.5, size_average=True,
                   max_tile_n=256))
    ref3 = _reference_focal_loss(logits2, targets2, alpha_rand, gamma=1.5,
                                 size_average=True)
    assert jnp.allclose(out3, ref3, rtol=1e-4, atol=1e-6), (out3, ref3)

    print("KERNEL_OK")
</pallas_src>

<mosaic_0001>
module attributes {stable_mosaic.version = 11 : i64} {
  func.func @_focal_loss_kernel(%arg0: i32, %arg1: memref<8x128xf32, #tpu.memory_space<vmem>>, %arg2: memref<1x128xi32, #tpu.memory_space<vmem>>, %arg3: memref<8x1xf32, #tpu.memory_space<vmem>>, %arg4: memref<1x128xf32, #tpu.memory_space<vmem>>) attributes {dimension_semantics = [#tpu.dimension_semantics<parallel>], iteration_bounds = array<i64: 1>, scalar_prefetch = 0 : i64, scratch_operands = 0 : i64, tpu.core_type = #tpu.core_type<tc>, window_params = [{transform_indices = @transform_0, window_bounds = array<i64: 8, 128>}, {transform_indices = @transform_1, window_bounds = array<i64: 1, 128>}, {pipeline_mode = #tpu.pipeline_mode<synchronous>, transform_indices = @transform_2, window_bounds = array<i64: 8, 1>}, {transform_indices = @transform_3, window_bounds = array<i64: 1, 128>}]} {
    %c0 = arith.constant 0 : index
    %c0_0 = arith.constant 0 : index
    %0 = vector.load %arg1[%c0, %c0_0] : memref<8x128xf32, #tpu.memory_space<vmem>>, vector<8x128xf32>
    %c0_1 = arith.constant 0 : index
    %c0_2 = arith.constant 0 : index
    %1 = vector.load %arg2[%c0_1, %c0_2] : memref<1x128xi32, #tpu.memory_space<vmem>>, vector<1x128xi32>
    %c0_3 = arith.constant 0 : index
    %c0_4 = arith.constant 0 : index
    %2 = vector.load %arg3[%c0_3, %c0_4] : memref<8x1xf32, #tpu.memory_space<vmem>>, vector<8x1xf32>
    %cst = arith.constant dense<0xFF800000> : vector<128xf32>
    %3 = vector.multi_reduction <maximumf>, %0, %cst [0] : vector<8x128xf32> to vector<128xf32>
    %4 = vector.shape_cast %3 : vector<128xf32> to vector<1x128xf32>
    %5 = vector.broadcast %4 : vector<1x128xf32> to vector<8x128xf32>
    %6 = arith.subf %0, %5 : vector<8x128xf32>
    %7 = math.exp %6 : vector<8x128xf32>
    %cst_5 = arith.constant dense<0.000000e+00> : vector<128xf32>
    %8 = vector.multi_reduction <add>, %7, %cst_5 [0] : vector<8x128xf32> to vector<128xf32>
    %9 = vector.shape_cast %8 : vector<128xf32> to vector<1x128xf32>
    %10 = math.log %9 : vector<1x128xf32>
    %11 = tpu.iota {dimensions = array<i32: 0>} : vector<8x128xi32>
    %12 = vector.broadcast %1 : vector<1x128xi32> to vector<8x128xi32>
    %13 = arith.cmpi eq, %11, %12 : vector<8x128xi32>
    %cst_6 = arith.constant 0.000000e+00 : f32
    %14 = vector.broadcast %cst_6 : f32 to vector<8x128xf32>
    %15 = arith.select %13, %0, %14 : vector<8x128xi1>, vector<8x128xf32>
    %cst_7 = arith.constant dense<0.000000e+00> : vector<128xf32>
    %16 = vector.multi_reduction <add>, %15, %cst_7 [0] : vector<8x128xf32> to vector<128xf32>
    %17 = vector.shape_cast %16 : vector<128xf32> to vector<1x128xf32>
    %cst_8 = arith.constant 0.000000e+00 : f32
    %18 = vector.broadcast %cst_8 : f32 to vector<8x128xf32>
    %19 = arith.select %13, %7, %18 : vector<8x128xi1>, vector<8x128xf32>
    %cst_9 = arith.constant dense<0.000000e+00> : vector<128xf32>
    %20 = vector.multi_reduction <add>, %19, %cst_9 [0] : vector<8x128xf32> to vector<128xf32>
    %21 = vector.shape_cast %20 : vector<128xf32> to vector<1x128xf32>
    %cst_10 = arith.constant 0.000000e+00 : f32
    %22 = vector.shape_cast %2 : vector<8x1xf32> to vector<8x1xf32>
    %23 = vector.broadcast %22 : vector<8x1xf32> to vector<8x128xf32>
    %24 = vector.broadcast %cst_10 : f32 to vector<8x128xf32>
    %25 = arith.select %13, %23, %24 : vector<8x128xi1>, vector<8x128xf32>
    %cst_11 = arith.constant dense<0.000000e+00> : vector<128xf32>
    %26 = vector.multi_reduction <add>, %25, %cst_11 [0] : vector<8x128xf32> to vector<128xf32>
    %27 = vector.shape_cast %26 : vector<128xf32> to vector<1x128xf32>
    %28 = arith.subf %17, %4 : vector<1x128xf32>
    %29 = arith.subf %28, %10 : vector<1x128xf32>
    %30 = arith.divf %21, %9 : vector<1x128xf32>
    %cst_12 = arith.constant 1.000000e+00 : f32
    %31 = vector.broadcast %cst_12 : f32 to vector<1x128xf32>
    %32 = arith.subf %31, %30 : vector<1x128xf32>
    %cst_13 = arith.constant 0.000000e+00 : f32
    %33 = vector.broadcast %cst_13 : f32 to vector<1x128xf32>
    %34 = arith.maximumf %32, %33 : vector<1x128xf32>
    %cst_14 = arith.constant 0.000000e+00 : f32
    %35 = vector.broadcast %cst_14 : f32 to vector<1x128xf32>
    %36 = arith.subf %35, %27 : vector<1x128xf32>
    %37 = arith.mulf %34, %34 : vector<1x128xf32>
    %38 = arith.mulf %36, %37 : vector<1x128xf32>
    %39 = arith.mulf %38, %29 : vector<1x128xf32>
    %40 = tpu.iota {dimensions = array<i32: 1>} : vector<1x128xi32>
    %c128_i32 = arith.constant 128 : i32
    %41 = arith.muli %arg0, %c128_i32 : i32
    %42 = vector.broadcast %41 : i32 to vector<1x128xi32>
    %43 = arith.addi %42, %40 : vector<1x128xi32>
    %c37_i32 = arith.constant 37 : i32
    %44 = vector.broadcast %c37_i32 : i32 to vector<1x128xi32>
    %45 = arith.cmpi slt, %43, %44 : vector<1x128xi32>
    %cst_15 = arith.constant 0.000000e+00 : f32
    %46 = vector.broadcast %cst_15 : f32 to vector<1x128xf32>
    %47 = arith.select %45, %39, %46 : vector<1x128xi1>, vector<1x128xf32>
    %cst_16 = arith.constant dense<0.000000e+00> : vector<1xf32>
    %48 = vector.multi_reduction <add>, %47, %cst_16 [1] : vector<1x128xf32> to vector<1xf32>
    %49 = vector.shape_cast %48 : vector<1xf32> to vector<1x1xf32>
    %50 = tpu.iota {dimensions = array<i32: 1>} : vector<1x128xi32>
    %c0_i32 = arith.constant 0 : i32
    %51 = vector.broadcast %c0_i32 : i32 to vector<1x128xi32>
    %52 = arith.cmpi eq, %50, %51 : vector<1x128xi32>
    %cst_17 = arith.constant 0.000000e+00 : f32
    %53 = vector.shape_cast %49 : vector<1x1xf32> to vector<1x1xf32>
    %54 = vector.broadcast %53 : vector<1x1xf32> to vector<1x128xf32>
    %55 = vector.broadcast %cst_17 : f32 to vector<1x128xf32>
    %56 = arith.select %52, %54, %55 : vector<1x128xi1>, vector<1x128xf32>
    %c0_18 = arith.constant 0 : index
    %c0_19 = arith.constant 0 : index
    %57 = vector.load %arg4[%c0_18, %c0_19] : memref<1x128xf32, #tpu.memory_space<vmem>>, vector<1x128xf32>
    tpu.vector_store %arg4[%c0_18, %c0_19], %56 {strides = array<i32>} : memref<1x128xf32, #tpu.memory_space<vmem>>, vector<1x128xf32>,
    return
  }
  func.func @transform_0(%arg0: i32) -> (i32, i32) {
    %c0_i32 = arith.constant 0 : i32
    %c0_i32_0 = arith.constant 0 : i32
    return %c0_i32, %arg0 : i32, i32
  }
  func.func @transform_1(%arg0: i32) -> (i32, i32) {
    %c0_i32 = arith.constant 0 : i32
    %c0_i32_0 = arith.constant 0 : i32
    return %c0_i32, %arg0 : i32, i32
  }
  func.func @transform_2(%arg0: i32) -> (i32, i32) {
    %c0_i32 = arith.constant 0 : i32
    %c0_i32_0 = arith.constant 0 : i32
    %c0_i32_1 = arith.constant 0 : i32
    return %c0_i32, %c0_i32_0 : i32, i32
  }
  func.func @transform_3(%arg0: i32) -> (i32, i32) {
    %c0_i32 = arith.constant 0 : i32
    %c0_i32_0 = arith.constant 0 : i32
    return %c0_i32, %arg0 : i32, i32
  }
}

</mosaic_0001>

<llo_original>
// kernel: tpu_custom_call.1
$region0: #{tpu_custom_call.1}
  #allocation0 [shape = 'u32[]', space=smem, size = 0x4, offset = 0x4, fixed_abs, tag = 'smem constant byte address 0x4 - core index']
  #allocation1 [shape = 'u32[144,128]{1,0:T(1,128)}', space=vmem, size = 0x12000, scoped, tag = 'internal scratch']
  %s0 = inlined_call_operand.vmem [shape: f32[8,37], index: 0, kind: input, shape index: {}]
  %s1 = inlined_call_operand.vmem [shape: s32[1,37], index: 1, kind: input, shape index: {}]
  %s2 = inlined_call_operand.vmem [shape: f32[8,1], index: 2, kind: input, shape index: {}]
  %s3 = inlined_call_operand.hbm [shape: f32[1,128], index: 3, kind: output, shape index: {}]
  %s4 = sld [smem:[#allocation0]]
  $region22: #{tpu_custom_call.1} parent=0
    _
  %s6 = ssub.s32 1, %s4
  %s7 = scalar_select 0, %s6, %s4
  $region1: #{tpu_custom_call.1} parent=0
    #allocation2 [shape = 'u8[512]{0}', space=vmem, size = 0x400, scoped, tag = 'output window, operand 0, single buffered']
    #allocation3 [shape = 's32[1]{0}', space=sflag, size = 0x4, scoped, tag = 'scoped memory for tpu_custom_call.1']
    %8 = vsyncpa [#allocation3], 0
    // Predicated region
    $region2: #{tpu_custom_call.1} parent=1 // pred_check
      _
    $region3: #{tpu_custom_call.1} parent=1 // pred_check_branch
      %10 = sbr.rel (0) target = $region5
    $region4: #{tpu_custom_call.1} parent=1 // pred_region
      _
    $region5: #{tpu_custom_call.1} parent=1 // pred_fallthru
      _
    // Predicated region
    $region6: #{tpu_custom_call.1} parent=1 // pred_check
      _
    $region7: #{tpu_custom_call.1} parent=1 // pred_check_branch
      %12 = sbr.rel (0) target = $region9
    $region8: #{tpu_custom_call.1} parent=1 // pred_region
      _
    $region9: #{tpu_custom_call.1} parent=1 // pred_fallthru
      _
    // Predicated region
    $region10: #{tpu_custom_call.1} parent=1 // pred_check
      _
    $region11: #{tpu_custom_call.1} parent=1 // pred_check_branch
      %14 = sbr.rel (0) target = $region13
    $region12: #{tpu_custom_call.1} parent=1 // pred_region
      _
    $region13: #{tpu_custom_call.1} parent=1 // pred_fallthru
      _
    %v15 = vld [vmem:[%s0] sm:$0xff]
    %v16 = vld [vmem:[%s1] sm:$0x1]
    %v17 = vld [vmem:[%s2] sm:$0xff]
    %v18 = vrot.slane %v15, 4
    %v19 = vmax.f32 %v15, %v18
    %v20 = vrot.slane %v19, 2
    %v21 = vmax.f32 %v19, %v20
    %v22 = vrot.slane %v21, 1
    %v23 = vmax.f32 %v21, %v22
    %v24 = vsub.f32 %v15, %v23
    %v25 = vmul.f32 %v24, 1.442695
    %v26 = vpow.pop %v25
    %v27 = vrot.slane %v26, 4
    %v28 = vadd.f32 %v26, %v27
    %v29 = vrot.slane %v28, 2
    %v30 = vadd.f32 %v28, %v29
    %v31 = vrot.slane %v30, 1
    %v32 = vadd.f32 %v30, %v31
    %v33 = vlog2.pop %v32
    %v34 = vmul.f32 %v33, 0.6931472
    %v35 = vlaneseq
    %v36 = vshrl.u32 %v35, 7
    %v37 = vlaneseq
    %v38 = vshrl.u32 %v37, 7
    %v39 = vsub.s32 0, %v38
    %v40 = vrot.slane %v16, %v39
    %vm41 = vcmp.eq.s32.totalorder %v36, %v40
    %v42 = vsel %vm41, %v15, 0.0
    %v43 = vrot.slane %v42, 4
    %v44 = vadd.f32 %v42, %v43
    %v45 = vrot.slane %v44, 2
    %v46 = vadd.f32 %v44, %v45
    %v47 = vrot.slane %v46, 1
    %v48 = vadd.f32 %v46, %v47
    %v49 = vsel %vm41, %v26, 0.0
    %v50 = vrot.slane %v49, 4
    %v51 = vadd.f32 %v49, %v50
    %v52 = vrot.slane %v51, 2
    %v53 = vadd.f32 %v51, %v52
    %v54 = vrot.slane %v53, 1
    %v55 = vadd.f32 %v53, %v54
    %57 = vset.pattern.permute.xlu0 0
    %58 = vperm.xlu0 %57, %v17
    %v59 = vpop.permute.xlu0 %58
    %v61 = vsel %vm41, %v59, 0.0
    %v62 = vrot.slane %v61, 4
    %v63 = vadd.f32 %v61, %v62
    %v64 = vrot.slane %v63, 2
    %v65 = vadd.f32 %v63, %v64
    %v66 = vrot.slane %v65, 1
    %v67 = vadd.f32 %v65, %v66
    %v68 = vsub.f32 %v48, %v23
    %v69 = vsub.f32 %v68, %v34
    %v70 = vrcp.pop %v32
    %v71 = vmul.f32 %v55, %v70
    %v72 = vsub.f32 1.0, %v71
    %v73 = vmax.f32 %v72, 0.0
    %v74 = vsub.f32 0.0, %v67
    %v75 = vmul.f32 %v73, %v73
    %v76 = vmul.f32 %v74, %v75
    %v77 = vmul.f32 %v76, %v69
    %v78 = vlaneseq
    %v79 = vand.u32 %v78, 127
    %s80 = smul.u32 0, 128
    %v81 = vstv %s80
    %v82 = vadd.s32 %v81, %v79
    %vm83 = vcmp.lt.s32.totalorder %v82, 37
    %v84 = vsel %vm83, %v77, 0.0
    %85 = vadd.xlane.f32.xlu0 %v84
    %v86 = vpop.xlane.xlu0 %85
    %vm87 = vcmp.eq.s32.totalorder %v79, 0
    %v88 = vsel %vm87, %v86, 0.0
    %89 = vst [vmem:[#allocation2] sm:$0x1] %v88
    // Predicated region
    $region14: #{tpu_custom_call.1} parent=1 // pred_check
      _
    $region15: #{tpu_custom_call.1} parent=1 // pred_check_branch
      %91 = sbr.rel (0) target = $region17
    $region16: #{tpu_custom_call.1} parent=1 // pred_region
      %s93 = ssub.s32 16, 16
      %94 = vsyncadd [#allocation3], %s93
      %s96 = sshll.u32 [#allocation2], 4
      %s97 = int_to_ptr.vmem [resolvable:$true] %s96
      %99 = dma.vmem_to_hbm [thread:$0]  %s97, 16, %s3, [#allocation3]
    $region17: #{tpu_custom_call.1} parent=1 // pred_fallthru
      _
    // Predicated region
    $region18: #{tpu_custom_call.1} parent=1 // pred_check
      _
    $region19: #{tpu_custom_call.1} parent=1 // pred_check_branch
      %101 = sbr.rel (0) target = $region21
    $region20: #{tpu_custom_call.1} parent=1 // pred_region
      %102 = dma.done [#allocation3], 16
    $region21: #{tpu_custom_call.1} parent=1 // pred_fallthru
      _
    %103 = vsyncpa [#allocation3], 1

</llo_original>
